<compile_context>
chip_gen: v5e
topology: v5e:2x2
jax: 0.10.0
libtpu: 0.0.40
codegen_flags: <defaults>
</compile_context>

<pallas_src>
import functools

import jax
import jax.numpy as jnp
from jax.experimental import pallas as pl
from jax.experimental.pallas import tpu as pltpu


def _mlp_kernel(x_ref, w1_ref, b1_ref, w2_ref, b2_ref, w3_ref, b3_ref, o_ref):
    # hidden1 = relu(x @ W1 + b1)
    h1 = jnp.dot(x_ref[...], w1_ref[...], preferred_element_type=jnp.float32)
    h1 = jnp.maximum(h1 + b1_ref[...], 0.0)
    # dropout(ratio=0.0) -> identity
    # hidden2 = relu(h1 @ W2 + b2)
    h2 = jnp.dot(h1, w2_ref[...], preferred_element_type=jnp.float32)
    h2 = jnp.maximum(h2 + b2_ref[...], 0.0)
    # dropout(ratio=0.0) -> identity
    # output = h2 @ W3 + b3   (narrow last dim == full output width)
    out = jnp.dot(h2, w3_ref[...], preferred_element_type=jnp.float32)
    o_ref[...] = (out + b3_ref[...]).astype(o_ref.dtype)


def _round_up(n, m):
    return ((n + m - 1) // m) * m


@functools.partial(jax.jit, static_argnames=("block_rows",))
def objective_estimator_forward(x, params, *, block_rows=4096):
    """Fused 3-layer MLP forward pass, batch-tiled Pallas kernel.

    x:      (B, input_size) float32
    params: dict with w1 (in, h1), b1 (1, h1), w2 (h1, h2), b2 (1, h2),
            w3 (h2, out), b3 (1, out)  -- weights transposed relative to
            PyTorch's (out, in) Linear layout.
    """
    w1, b1 = params["w1"], params["b1"]
    w2, b2 = params["w2"], params["b2"]
    w3, b3 = params["w3"], params["b3"]
    B, in_size = x.shape
    h1_size = w1.shape[1]
    h2_size = w2.shape[1]
    out_size = w3.shape[1]

    # ---- batch tile: multiple of 8 sublanes, no wrapper-side padding ----
    tile_b = min(block_rows, _round_up(B, 8))
    tile_b = max(8, (tile_b // 8) * 8)
    # Ensure >= 2 grid steps for megacore sharding (v7x) when the batch is
    # large enough to split on 8-row boundaries.
    if pl.cdiv(B, tile_b) < 2 and B > 8:
        tile_b = max(8, _round_up((B + 1) // 2, 8))

    grid = (pl.cdiv(B, tile_b),)  # partial last block: writes are masked

    # Weights/biases: full-extent block, constant index_map -> resident in VMEM.
    def resident(a):
        return pl.BlockSpec(a.shape, lambda i: (0, 0))

    in_specs = [
        pl.BlockSpec((tile_b, in_size), lambda i: (i, 0)),   # x tile
        resident(w1), resident(b1),
        resident(w2), resident(b2),
        resident(w3), resident(b3),
    ]
    out_specs = pl.BlockSpec((tile_b, out_size), lambda i: (i, 0))

    # ---- cost estimate for the XLA scheduler ----
    flops = 2 * B * (in_size * h1_size + h1_size * h2_size + h2_size * out_size)
    bytes_accessed = 4 * (
        B * in_size + B * out_size
        + w1.size + b1.size + w2.size + b2.size + w3.size + b3.size
    )
    cost = pl.CostEstimate(flops=flops, transcendentals=0,
                           bytes_accessed=bytes_accessed)

    # ---- VMEM budget: resident weights + double-buffered x / out tiles +
    #      intermediate activations, with headroom; capped at 48 MiB ----
    weight_bytes = 4 * (w1.size + b1.size + w2.size + b2.size
                        + w3.size + b3.size)
    io_bytes = 2 * 4 * tile_b * (in_size + out_size)          # double-buffered
    act_bytes = 4 * tile_b * (h1_size + h2_size + out_size)
    vmem_limit = 2 * (weight_bytes + io_bytes + act_bytes) + (8 << 20)
    vmem_limit = max(16 << 20, min(vmem_limit, 48 << 20))

    return pl.pallas_call(
        _mlp_kernel,
        out_shape=jax.ShapeDtypeStruct((B, out_size), x.dtype),
        grid=grid,
        in_specs=in_specs,
        out_specs=out_specs,
        compiler_params=pltpu.CompilerParams(
            dimension_semantics=("parallel",),
            vmem_limit_bytes=vmem_limit,
        ),
        cost_estimate=cost,
    )(x, w1, b1, w2, b2, w3, b3)


def init_params(key, input_size, hidden_sizes, output_size):
    """Deterministic init mirroring torch.nn.Linear's U(-1/sqrt(fan_in), +)."""
    h1, h2 = hidden_sizes
    keys = jax.random.split(key, 6)

    def lin(kw, kb, fan_in, fan_out):
        bound = 1.0 / jnp.sqrt(jnp.float32(fan_in))
        # store weight as (fan_in, fan_out) == torch weight.T
        w = jax.random.uniform(kw, (fan_in, fan_out), jnp.float32, -bound, bound)
        b = jax.random.uniform(kb, (1, fan_out), jnp.float32, -bound, bound)
        return w, b

    w1, b1 = lin(keys[0], keys[1], input_size, h1)
    w2, b2 = lin(keys[2], keys[3], h1, h2)
    w3, b3 = lin(keys[4], keys[5], h2, output_size)
    return {"w1": w1, "b1": b1, "w2": w2, "b2": b2, "w3": w3, "b3": b3}


def _reference_forward(x, p):
    h1 = jnp.maximum(x @ p["w1"] + p["b1"], 0.0)
    h2 = jnp.maximum(h1 @ p["w2"] + p["b2"], 0.0)
    return h2 @ p["w3"] + p["b3"]


if __name__ == "__main__":
    # Small shapes consistent with the module: flat feature vectors.
    input_size = 16
    hidden_sizes = (32, 32)
    output_size = 4

    key = jax.random.PRNGKey(0)
    kx1, kx2, kx3, kp = jax.random.split(key, 4)
    params = init_params(kp, input_size, hidden_sizes, output_size)

    # Case 1: small batch, single grid step, batch == tile.
    x1 = jax.random.normal(kx1, (8, input_size), jnp.float32)
    out1 = jax.block_until_ready(objective_estimator_forward(x1, params))
    ref1 = _reference_forward(x1, params)
    assert out1.shape == (8, output_size)
    assert jnp.allclose(out1, ref1, atol=1e-5, rtol=1e-5)

    # Case 2: batch not a multiple of the tile -> multi-step grid with a
    # masked partial last block (no wrapper pad/slice).
    x2 = jax.random.normal(kx2, (20, input_size), jnp.float32)
    out2 = jax.block_until_ready(
        objective_estimator_forward(x2, params, block_rows=8))
    ref2 = _reference_forward(x2, params)
    assert out2.shape == (20, output_size)
    assert jnp.allclose(out2, ref2, atol=1e-5, rtol=1e-5)

    # Case 3: default block_rows with a larger batch -> tile capped so the
    # grid has >= 2 "parallel" steps (megacore path) + partial edge block.
    x3 = jax.random.normal(kx3, (100, input_size), jnp.float32)
    out3 = jax.block_until_ready(objective_estimator_forward(x3, params))
    ref3 = _reference_forward(x3, params)
    assert out3.shape == (100, output_size)
    assert jnp.allclose(out3, ref3, atol=1e-5, rtol=1e-5)

    print("KERNEL_OK")
</pallas_src>

<mosaic_0001>
module attributes {stable_mosaic.version = 11 : i64} {
  func.func @_mlp_kernel(%arg0: i32, %arg1: memref<8x16xf32, #tpu.memory_space<vmem>>, %arg2: memref<16x32xf32, #tpu.memory_space<vmem>>, %arg3: memref<1x32xf32, #tpu.memory_space<vmem>>, %arg4: memref<32x32xf32, #tpu.memory_space<vmem>>, %arg5: memref<1x32xf32, #tpu.memory_space<vmem>>, %arg6: memref<32x4xf32, #tpu.memory_space<vmem>>, %arg7: memref<1x4xf32, #tpu.memory_space<vmem>>, %arg8: memref<8x4xf32, #tpu.memory_space<vmem>>) attributes {dimension_semantics = [#tpu.dimension_semantics<parallel>], iteration_bounds = array<i64: 1>, scalar_prefetch = 0 : i64, scratch_operands = 0 : i64, tpu.core_type = #tpu.core_type<tc>, window_params = [{transform_indices = @transform_0, window_bounds = array<i64: 8, 16>}, {pipeline_mode = #tpu.pipeline_mode<synchronous>, transform_indices = @transform_1, window_bounds = array<i64: 16, 32>}, {pipeline_mode = #tpu.pipeline_mode<synchronous>, transform_indices = @transform_2, window_bounds = array<i64: 1, 32>}, {pipeline_mode = #tpu.pipeline_mode<synchronous>, transform_indices = @transform_3, window_bounds = array<i64: 32, 32>}, {pipeline_mode = #tpu.pipeline_mode<synchronous>, transform_indices = @transform_4, window_bounds = array<i64: 1, 32>}, {pipeline_mode = #tpu.pipeline_mode<synchronous>, transform_indices = @transform_5, window_bounds = array<i64: 32, 4>}, {pipeline_mode = #tpu.pipeline_mode<synchronous>, transform_indices = @transform_6, window_bounds = array<i64: 1, 4>}, {transform_indices = @transform_7, window_bounds = array<i64: 8, 4>}]} {
    %c0 = arith.constant 0 : index
    %c0_0 = arith.constant 0 : index
    %0 = vector.load %arg1[%c0, %c0_0] : memref<8x16xf32, #tpu.memory_space<vmem>>, vector<8x16xf32>
    %c0_1 = arith.constant 0 : index
    %c0_2 = arith.constant 0 : index
    %1 = vector.load %arg2[%c0_1, %c0_2] : memref<16x32xf32, #tpu.memory_space<vmem>>, vector<16x32xf32>
    %cst = arith.constant dense<0.000000e+00> : vector<8x32xf32>
    %2 = tpu.matmul %0, %1, %cst {dimension_numbers = #tpu.dot_dimension_numbers<[1], [0], [0], [1], [0, 0, 1, 1], [], []>} : vector<8x16xf32>, vector<16x32xf32>, vector<8x32xf32> -> vector<8x32xf32>
    %c0_3 = arith.constant 0 : index
    %c0_4 = arith.constant 0 : index
    %3 = vector.load %arg3[%c0_3, %c0_4] : memref<1x32xf32, #tpu.memory_space<vmem>>, vector<1x32xf32>
    %4 = vector.broadcast %3 : vector<1x32xf32> to vector<8x32xf32>
    %5 = arith.addf %2, %4 : vector<8x32xf32>
    %cst_5 = arith.constant 0.000000e+00 : f32
    %6 = vector.broadcast %cst_5 : f32 to vector<8x32xf32>
    %7 = arith.maximumf %5, %6 : vector<8x32xf32>
    %c0_6 = arith.constant 0 : index
    %c0_7 = arith.constant 0 : index
    %8 = vector.load %arg4[%c0_6, %c0_7] : memref<32x32xf32, #tpu.memory_space<vmem>>, vector<32x32xf32>
    %cst_8 = arith.constant dense<0.000000e+00> : vector<8x32xf32>
    %9 = tpu.matmul %7, %8, %cst_8 {dimension_numbers = #tpu.dot_dimension_numbers<[1], [0], [0], [1], [0, 0, 1, 1], [], []>} : vector<8x32xf32>, vector<32x32xf32>, vector<8x32xf32> -> vector<8x32xf32>
    %c0_9 = arith.constant 0 : index
    %c0_10 = arith.constant 0 : index
    %10 = vector.load %arg5[%c0_9, %c0_10] : memref<1x32xf32, #tpu.memory_space<vmem>>, vector<1x32xf32>
    %11 = vector.broadcast %10 : vector<1x32xf32> to vector<8x32xf32>
    %12 = arith.addf %9, %11 : vector<8x32xf32>
    %cst_11 = arith.constant 0.000000e+00 : f32
    %13 = vector.broadcast %cst_11 : f32 to vector<8x32xf32>
    %14 = arith.maximumf %12, %13 : vector<8x32xf32>
    %c0_12 = arith.constant 0 : index
    %c0_13 = arith.constant 0 : index
    %15 = vector.load %arg6[%c0_12, %c0_13] : memref<32x4xf32, #tpu.memory_space<vmem>>, vector<32x4xf32>
    %cst_14 = arith.constant dense<0.000000e+00> : vector<8x4xf32>
    %16 = tpu.matmul %14, %15, %cst_14 {dimension_numbers = #tpu.dot_dimension_numbers<[1], [0], [0], [1], [0, 0, 1, 1], [], []>} : vector<8x32xf32>, vector<32x4xf32>, vector<8x4xf32> -> vector<8x4xf32>
    %c0_15 = arith.constant 0 : index
    %c0_16 = arith.constant 0 : index
    %17 = vector.load %arg7[%c0_15, %c0_16] : memref<1x4xf32, #tpu.memory_space<vmem>>, vector<1x4xf32>
    %18 = vector.broadcast %17 : vector<1x4xf32> to vector<8x4xf32>
    %19 = arith.addf %16, %18 : vector<8x4xf32>
    %c0_17 = arith.constant 0 : index
    %c0_18 = arith.constant 0 : index
    %20 = vector.load %arg8[%c0_17, %c0_18] : memref<8x4xf32, #tpu.memory_space<vmem>>, vector<8x4xf32>
    tpu.vector_store %arg8[%c0_17, %c0_18], %19 {strides = array<i32>} : memref<8x4xf32, #tpu.memory_space<vmem>>, vector<8x4xf32>,
    return
  }
  func.func @transform_0(%arg0: i32) -> (i32, i32) {
    %c0_i32 = arith.constant 0 : i32
    %c0_i32_0 = arith.constant 0 : i32
    return %arg0, %c0_i32 : i32, i32
  }
  func.func @transform_1(%arg0: i32) -> (i32, i32) {
    %c0_i32 = arith.constant 0 : i32
    %c0_i32_0 = arith.constant 0 : i32
    %c0_i32_1 = arith.constant 0 : i32
    return %c0_i32, %c0_i32_0 : i32, i32
  }
  func.func @transform_2(%arg0: i32) -> (i32, i32) {
    %c0_i32 = arith.constant 0 : i32
    %c0_i32_0 = arith.constant 0 : i32
    %c0_i32_1 = arith.constant 0 : i32
    return %c0_i32, %c0_i32_0 : i32, i32
  }
  func.func @transform_3(%arg0: i32) -> (i32, i32) {
    %c0_i32 = arith.constant 0 : i32
    %c0_i32_0 = arith.constant 0 : i32
    %c0_i32_1 = arith.constant 0 : i32
    return %c0_i32, %c0_i32_0 : i32, i32
  }
  func.func @transform_4(%arg0: i32) -> (i32, i32) {
    %c0_i32 = arith.constant 0 : i32
    %c0_i32_0 = arith.constant 0 : i32
    %c0_i32_1 = arith.constant 0 : i32
    return %c0_i32, %c0_i32_0 : i32, i32
  }
  func.func @transform_5(%arg0: i32) -> (i32, i32) {
    %c0_i32 = arith.constant 0 : i32
    %c0_i32_0 = arith.constant 0 : i32
    %c0_i32_1 = arith.constant 0 : i32
    return %c0_i32, %c0_i32_0 : i32, i32
  }
  func.func @transform_6(%arg0: i32) -> (i32, i32) {
    %c0_i32 = arith.constant 0 : i32
    %c0_i32_0 = arith.constant 0 : i32
    %c0_i32_1 = arith.constant 0 : i32
    return %c0_i32, %c0_i32_0 : i32, i32
  }
  func.func @transform_7(%arg0: i32) -> (i32, i32) {
    %c0_i32 = arith.constant 0 : i32
    %c0_i32_0 = arith.constant 0 : i32
    return %arg0, %c0_i32 : i32, i32
  }
}

</mosaic_0001>

<llo_original>
// kernel: objective_estimator_forward.1
$region0: #{objective_estimator_forward.1}
  #allocation0 [shape = 'u32[]', space=smem, size = 0x4, offset = 0x4, fixed_abs, tag = 'smem constant byte address 0x4 - core index']
  #allocation1 [shape = 'u32[72,128]{1,0:T(1,128)}', space=vmem, size = 0x9000, scoped, tag = 'internal scratch']
  %s0 = inlined_call_operand.vmem [shape: f32[8,16], index: 0, kind: input, shape index: {}]
  %s1 = inlined_call_operand.hbm [shape: f32[16,32], index: 1, kind: input, shape index: {}]
  %s2 = inlined_call_operand.hbm [shape: f32[1,32], index: 2, kind: input, shape index: {}]
  %s3 = inlined_call_operand.vmem [shape: f32[32,32], index: 3, kind: input, shape index: {}]
  %s4 = inlined_call_operand.hbm [shape: f32[1,32], index: 4, kind: input, shape index: {}]
  %s5 = inlined_call_operand.vmem [shape: f32[32,4], index: 5, kind: input, shape index: {}]
  %s6 = inlined_call_operand.hbm [shape: f32[1,4], index: 6, kind: input, shape index: {}]
  %s7 = inlined_call_operand.vmem [shape: f32[8,4], index: 7, kind: output, shape index: {}]
  %s8 = sld [smem:[#allocation0]]
  $region54: #{objective_estimator_forward.1} parent=0
    _
  %s10 = ssub.s32 1, %s8
  %s11 = scalar_select 0, %s10, %s8
  $region1: #{objective_estimator_forward.1} parent=0
    #allocation2 [shape = 'u8[8192]{0}', space=vmem, size = 0x2000, scoped, tag = 'input window, operand 1, single buffered']
    #allocation3 [shape = 's32[1]{0}', space=sflag, size = 0x4, scoped, tag = 'scoped memory for objective_estimator_forward.1']
    #allocation4 [shape = 'u8[512]{0}', space=vmem, size = 0x400, scoped, tag = 'input window, operand 2, single buffered']
    #allocation5 [shape = 's32[1]{0}', space=sflag, size = 0x4, scoped, tag = 'scoped memory for objective_estimator_forward.1']
    #allocation6 [shape = 'u8[512]{0}', space=vmem, size = 0x400, scoped, tag = 'input window, operand 4, single buffered']
    #allocation7 [shape = 'u8[512]{0}', space=vmem, size = 0x400, scoped, tag = 'input window, operand 6, single buffered']
    #allocation8 [shape = 's32[1]{0}', space=sflag, size = 0x4, scoped, tag = 'scoped memory for objective_estimator_forward.1']
    %12 = vsyncpa [#allocation3], 0
    %13 = vsyncpa [#allocation5], 0
    %14 = vsyncpa [#allocation8], 0
    // Predicated region
    $region2: #{objective_estimator_forward.1} parent=1 // pred_check
      _
    $region3: #{objective_estimator_forward.1} parent=1 // pred_check_branch
      %16 = sbr.rel (0) target = $region5
    $region4: #{objective_estimator_forward.1} parent=1 // pred_region
      _
    $region5: #{objective_estimator_forward.1} parent=1 // pred_fallthru
      _
    // Predicated region
    $region6: #{objective_estimator_forward.1} parent=1 // pred_check
      _
    $region7: #{objective_estimator_forward.1} parent=1 // pred_check_branch
      %18 = sbr.rel (0) target = $region9
    $region8: #{objective_estimator_forward.1} parent=1 // pred_region
      %20 = vsyncadd [#allocation3], 0
      %s21 = sshll.u32 %s1, 4
      %s22 = int_to_ptr.hbm [resolvable:$true] %s21
      %s23 = sshll.u32 [#allocation2], 4
      %s24 = int_to_ptr.vmem [resolvable:$true] %s23
      %29 = dma.hbm_to_vmem [thread:$0]  %s22, 256, %s24, [#allocation3], 128, 128, 8
    $region9: #{objective_estimator_forward.1} parent=1 // pred_fallthru
      _
    // Predicated region
    $region10: #{objective_estimator_forward.1} parent=1 // pred_check
      _
    $region11: #{objective_estimator_forward.1} parent=1 // pred_check_branch
      %31 = sbr.rel (0) target = $region13
    $region12: #{objective_estimator_forward.1} parent=1 // pred_region
      %33 = vsyncadd [#allocation5], 0
      %s35 = sshll.u32 %s2, 4
      %s36 = int_to_ptr.hbm [resolvable:$true] %s35
      %s37 = sshll.u32 [#allocation4], 4
      %s38 = int_to_ptr.vmem [resolvable:$true] %s37
      %40 = dma.hbm_to_vmem [thread:$0]  %s36, 16, %s38, [#allocation5]
    $region13: #{objective_estimator_forward.1} parent=1 // pred_fallthru
      _
    // Predicated region
    $region14: #{objective_estimator_forward.1} parent=1 // pred_check
      _
    $region15: #{objective_estimator_forward.1} parent=1 // pred_check_branch
      %42 = sbr.rel (0) target = $region17
    $region16: #{objective_estimator_forward.1} parent=1 // pred_region
      _
    $region17: #{objective_estimator_forward.1} parent=1 // pred_fallthru
      _
    // Predicated region
    $region18: #{objective_estimator_forward.1} parent=1 // pred_check
      _
    $region19: #{objective_estimator_forward.1} parent=1 // pred_check_branch
      %44 = sbr.rel (0) target = $region21
    $region20: #{objective_estimator_forward.1} parent=1 // pred_region
      %46 = vsyncadd [#allocation5], 0
      %s48 = sshll.u32 %s4, 4
      %s49 = int_to_ptr.hbm [resolvable:$true] %s48
      %s50 = sshll.u32 [#allocation6], 4
      %s51 = int_to_ptr.vmem [resolvable:$true] %s50
      %53 = dma.hbm_to_vmem [thread:$0]  %s49, 16, %s51, [#allocation5]
    $region21: #{objective_estimator_forward.1} parent=1 // pred_fallthru
      _
    // Predicated region
    $region22: #{objective_estimator_forward.1} parent=1 // pred_check
      _
    $region23: #{objective_estimator_forward.1} parent=1 // pred_check_branch
      %55 = sbr.rel (0) target = $region25
    $region24: #{objective_estimator_forward.1} parent=1 // pred_region
      _
    $region25: #{objective_estimator_forward.1} parent=1 // pred_fallthru
      _
    // Predicated region
    $region26: #{objective_estimator_forward.1} parent=1 // pred_check
      _
    $region27: #{objective_estimator_forward.1} parent=1 // pred_check_branch
      %57 = sbr.rel (0) target = $region29
    $region28: #{objective_estimator_forward.1} parent=1 // pred_region
      %59 = vsyncadd [#allocation8], 0
      %s61 = sshll.u32 %s6, 4
      %s62 = int_to_ptr.hbm [resolvable:$true] %s61
      %s63 = sshll.u32 [#allocation7], 4
      %s64 = int_to_ptr.vmem [resolvable:$true] %s63
      %66 = dma.hbm_to_vmem [thread:$0]  %s62, 16, %s64, [#allocation8]
    $region29: #{objective_estimator_forward.1} parent=1 // pred_fallthru
      _
    // Predicated region
    $region30: #{objective_estimator_forward.1} parent=1 // pred_check
      _
    $region31: #{objective_estimator_forward.1} parent=1 // pred_check_branch
      %68 = sbr.rel (0) target = $region33
    $region32: #{objective_estimator_forward.1} parent=1 // pred_region
      %70 = dma.done [#allocation3], 256
    $region33: #{objective_estimator_forward.1} parent=1 // pred_fallthru
      _
    // Predicated region
    $region34: #{objective_estimator_forward.1} parent=1 // pred_check
      _
    $region35: #{objective_estimator_forward.1} parent=1 // pred_check_branch
      %72 = sbr.rel (0) target = $region37
    $region36: #{objective_estimator_forward.1} parent=1 // pred_region
      %74 = dma.done [#allocation5], 16
    $region37: #{objective_estimator_forward.1} parent=1 // pred_fallthru
      _
    // Predicated region
    $region38: #{objective_estimator_forward.1} parent=1 // pred_check
      _
    $region39: #{objective_estimator_forward.1} parent=1 // pred_check_branch
      %76 = sbr.rel (0) target = $region41
    $region40: #{objective_estimator_forward.1} parent=1 // pred_region
      %78 = dma.done [#allocation5], 16
    $region41: #{objective_estimator_forward.1} parent=1 // pred_fallthru
      _
    // Predicated region
    $region42: #{objective_estimator_forward.1} parent=1 // pred_check
      _
    $region43: #{objective_estimator_forward.1} parent=1 // pred_check_branch
      %80 = sbr.rel (0) target = $region45
    $region44: #{objective_estimator_forward.1} parent=1 // pred_region
      %82 = dma.done [#allocation8], 16
    $region45: #{objective_estimator_forward.1} parent=1 // pred_fallthru
      _
    %v83 = vld [vmem:[%s0] sm:$0xff]
    %v84 = vld [vmem:[#allocation2] sm:$0xff]
    %v85 = vld [vmem:[#allocation2 + $0x8] sm:$0xff]
    %v86 = vld [vmem:[#allocation4] sm:$0x1]
    %v88 = vperm.slane %v86, 0
    %vm90 = vcmask 130048
    %v92 = vsel %vm90, %v83, 0
    %94 = vmatpush.msra.mxu0 0.0
    %95 = vmatpush.msra.mxu0 0.0
    %96 = vmatpush.msra.mxu0 0.0
    %97 = vmatpush.msra.mxu0 0.0
    %98 = vmatpush.msra.mxu0 0.0
    %99 = vmatpush.msra.mxu0 0.0
    %100 = vmatpush.msra.mxu0 0.0
    %101 = vmatpush.msra.mxu0 0.0
    %102 = vmatpush.msra.mxu0 0.0
    %103 = vmatpush.msra.mxu0 0.0
    %104 = vmatpush.msra.mxu0 0.0
    %105 = vmatpush.msra.mxu0 0.0
    %106 = vmatpush.msra.mxu0 0.0
    %107 = vmatpush.msra.mxu0 0.0
    %108 = vmatpush.msra.mxu0 %v85
    %109 = vmatpush.msra.mxu0 %v84
    %110 = vmatmul.f32.gmra.mxu0 %v92
    %v111 = vpop.f32.mrf.mxu0
    %v112 = vadd.f32 %v88, %v111
    %113 = vdwg.mxu0
    %v114 = vmax.f32 %v112, 0.0
    %v115 = vld [vmem:[%s3] sm:$0xff]
    %v116 = vld [vmem:[%s3 + $0x8] sm:$0xff]
    %v117 = vld [vmem:[%s3 + $0x10] sm:$0xff]
    %v118 = vld [vmem:[%s3 + $0x18] sm:$0xff]
    %v119 = vld [vmem:[#allocation6] sm:$0x1]
    %v121 = vperm.slane %v119, 0
    %vm123 = vcmask 261120
    %v125 = vsel %vm123, %v114, 0
    %127 = vmatpush.msra.mxu0 0.0
    %128 = vmatpush.msra.mxu0 0.0
    %129 = vmatpush.msra.mxu0 0.0
    %130 = vmatpush.msra.mxu0 0.0
    %131 = vmatpush.msra.mxu0 0.0
    %132 = vmatpush.msra.mxu0 0.0
    %133 = vmatpush.msra.mxu0 0.0
    %134 = vmatpush.msra.mxu0 0.0
    %135 = vmatpush.msra.mxu0 0.0
    %136 = vmatpush.msra.mxu0 0.0
    %137 = vmatpush.msra.mxu0 0.0
    %138 = vmatpush.msra.mxu0 0.0
    %139 = vmatpush.msra.mxu0 %v118
    %140 = vmatpush.msra.mxu0 %v117
    %141 = vmatpush.msra.mxu0 %v116
    %142 = vmatpush.msra.mxu0 %v115
    %143 = vmatmul.f32.gmra.mxu0 %v125
    %v144 = vpop.f32.mrf.mxu0
    %v145 = vadd.f32 %v121, %v144
    %146 = vdwg.mxu0
    %v147 = vmax.f32 %v145, 0.0
    %v148 = vld [vmem:[%s5] sm:$0xff]
    %v149 = vld [vmem:[%s5 + $0x8] sm:$0xff]
    %v150 = vld [vmem:[%s5 + $0x10] sm:$0xff]
    %v151 = vld [vmem:[%s5 + $0x18] sm:$0xff]
    %v152 = vld [vmem:[#allocation7] sm:$0x1]
    %v154 = vperm.slane %v152, 0
    %v157 = vsel %vm123, %v147, 0
    %159 = vmatpush.msra.mxu0 0.0
    %160 = vmatpush.msra.mxu0 0.0
    %161 = vmatpush.msra.mxu0 0.0
    %162 = vmatpush.msra.mxu0 0.0
    %163 = vmatpush.msra.mxu0 0.0
    %164 = vmatpush.msra.mxu0 0.0
    %165 = vmatpush.msra.mxu0 0.0
    %166 = vmatpush.msra.mxu0 0.0
    %167 = vmatpush.msra.mxu0 0.0
    %168 = vmatpush.msra.mxu0 0.0
    %169 = vmatpush.msra.mxu0 0.0
    %170 = vmatpush.msra.mxu0 0.0
    %171 = vmatpush.msra.mxu0 %v151
    %172 = vmatpush.msra.mxu0 %v150
    %173 = vmatpush.msra.mxu0 %v149
    %174 = vmatpush.msra.mxu0 %v148
    %175 = vmatmul.f32.gmra.mxu0 %v157
    %v176 = vpop.f32.mrf.mxu0
    %v177 = vadd.f32 %v154, %v176
    %178 = vdwg.mxu0
    %vm179 = vcmask 31744
    %180 = vst.msk [vmem:[%s7] sm:$0xff] %vm179, %v177
    // Predicated region
    $region46: #{objective_estimator_forward.1} parent=1 // pred_check
      _
    $region47: #{objective_estimator_forward.1} parent=1 // pred_check_branch
      %182 = sbr.rel (0) target = $region49
    $region48: #{objective_estimator_forward.1} parent=1 // pred_region
      _
    $region49: #{objective_estimator_forward.1} parent=1 // pred_fallthru
      _
    // Predicated region
    $region50: #{objective_estimator_forward.1} parent=1 // pred_check
      _
    $region51: #{objective_estimator_forward.1} parent=1 // pred_check_branch
      %184 = sbr.rel (0) target = $region53
    $region52: #{objective_estimator_forward.1} parent=1 // pred_region
      _
    $region53: #{objective_estimator_forward.1} parent=1 // pred_fallthru
      _
    %185 = vsyncpa [#allocation3], 1
    %186 = vsyncpa [#allocation5], 1
    %187 = vsyncpa [#allocation8], 1

</llo_original>
